<compile_context>
chip_gen: v6e
topology: v6e:2x2x1
jax: 0.10.0
libtpu: 0.0.40
codegen_flags: <defaults>
</compile_context>

<pallas_src>
import jax
import jax.numpy as jnp
from jax import lax
from jax.experimental import pallas as pl
from jax.experimental.pallas import tpu as pltpu


def _leaky_relu(v):
    # leaky_relu(v, 0.2) == max(v, 0.2*v): mul+max instead of cmp+mul+select.
    return jnp.maximum(v, 0.2 * v)


# ----------------------------- kernels ---------------------------------------


def _affine_coupling_kernel_fused(x_ref, w0_ref, w1_ref, w2_ref, b_ref,
                                  z_ref, logdet_ref):
    """Both MLP branches fused into 3 wide matmuls (v6e / v7x path)."""
    k = w0_ref.shape[0]          # static feature-split point (D // 2)
    tb = x_ref.shape[0]
    mxu_dtype = w0_ref.dtype     # bf16 (or f32 if exactness requested)

    x0 = x_ref[:, :k]            # (TB, k) identity half, f32
    x1 = x_ref[:, k:]            # (TB, k)

    b0 = b_ref[0:1, :]           # (1, 2k) packed biases, f32
    b1 = b_ref[1:2, :]
    b2 = b_ref[2:3, :]

    # Lane-mask activation select: tanh on the scaling half, leaky_relu on the
    # shifting half -- pure VPU/EUP work, no concatenate / lane re-layout temp.
    col = lax.broadcasted_iota(jnp.int32, (tb, 2 * k), 1)
    s_half = col < k

    def act(u):
        return jnp.where(s_half, jnp.tanh(u), _leaky_relu(u))

    # Layer 0: x0 @ [sw0 | tw0]  -> (TB, 2k)   (bf16 operands, f32 accumulation)
    u = jnp.dot(x0.astype(mxu_dtype), w0_ref[...],
                preferred_element_type=jnp.float32) + b0
    hg = act(u)
    # Layer 1: [h | g] @ blockdiag(sw1, tw1)
    u = jnp.dot(hg.astype(mxu_dtype), w1_ref[...],
                preferred_element_type=jnp.float32) + b1
    hg = act(u)
    # Layer 2: [h | g] @ blockdiag(sw2, tw2)
    u = jnp.dot(hg.astype(mxu_dtype), w2_ref[...],
                preferred_element_type=jnp.float32) + b2
    s = jnp.tanh(u[:, :k])       # scaling branch output
    t = _leaky_relu(u[:, k:])    # shifting branch output

    # Direct half-stores: no materialized (TB, 2k) concat temp.
    z_ref[:, :k] = x0
    z_ref[:, k:] = jnp.exp(s) * x1 + t
    logdet_ref[...] = jnp.sum(s, axis=1, keepdims=True)   # (TB, 1)


def _affine_coupling_kernel_split(x_ref, w0_ref, w1s_ref, w1t_ref,
                                  w2s_ref, w2t_ref, b_ref, z_ref, logdet_ref):
    """Layers 1/2 un-fused into per-branch (k,k) matmuls (v5e path: its 128x128
    MXU would otherwise pay full price for the zero blocks of the block-diag)."""
    k = w0_ref.shape[0]
    mxu_dtype = w0_ref.dtype

    x0 = x_ref[:, :k]
    x1 = x_ref[:, k:]
    b = b_ref[...]                      # (3, 2k) f32

    # Layer 0 stays fused: x0 @ [sw0 | tw0].
    u = jnp.dot(x0.astype(mxu_dtype), w0_ref[...],
                preferred_element_type=jnp.float32) + b[0:1, :]
    h = jnp.tanh(u[:, :k])
    g = _leaky_relu(u[:, k:])

    # Layer 1: two (TB,k)@(k,k) matmuls.
    uh = jnp.dot(h.astype(mxu_dtype), w1s_ref[...],
                 preferred_element_type=jnp.float32) + b[1:2, :k]
    ug = jnp.dot(g.astype(mxu_dtype), w1t_ref[...],
                 preferred_element_type=jnp.float32) + b[1:2, k:]
    h = jnp.tanh(uh)
    g = _leaky_relu(ug)

    # Layer 2.
    uh = jnp.dot(h.astype(mxu_dtype), w2s_ref[...],
                 preferred_element_type=jnp.float32) + b[2:3, :k]
    ug = jnp.dot(g.astype(mxu_dtype), w2t_ref[...],
                 preferred_element_type=jnp.float32) + b[2:3, k:]
    s = jnp.tanh(uh)
    t = _leaky_relu(ug)

    z_ref[:, :k] = x0
    z_ref[:, k:] = jnp.exp(s) * x1 + t
    logdet_ref[...] = jnp.sum(s, axis=1, keepdims=True)


# ----------------------------- wrapper ----------------------------------------


def _use_split_layers():
    """Perf-only gate: un-fuse layers 1/2 on v5e (128x128 MXU)."""
    try:
        kind = jax.devices()[0].device_kind.lower()
    except Exception:
        return False
    return ("v5 lite" in kind) or ("v5e" in kind) or ("v5litepod" in kind)


def _pick_batch_tile(B):
    """Sublane-aligned tile dividing B, capped at B//4 so the grid has >= 4
    steps (DMA/compute overlap + an even split across v7x's 2 TensorCores)."""
    cap = max(8, B // 4)
    for tb in (512, 256, 128, 64, 32, 16, 8):
        if tb <= cap and B % tb == 0:
            return tb
    # TODO(synk): pad ragged batches instead of falling back to one giant block.
    return B


def affine_coupling_forward(x, scaling_params, shifting_params,
                            *, mxu_dtype=jnp.bfloat16):
    """x: [B, D] float32.  *_params: list of 3 (W_t, b) pairs, W_t shaped (in, out).

    Pass mxu_dtype=jnp.float32 for bit-exact (vs f32 reference) results at
    ~3-4x lower MXU throughput.
    """
    B, D = x.shape
    k = D // 2
    f32 = jnp.float32

    s_ws = [w.astype(f32) for (w, _) in scaling_params]
    s_bs = [b.astype(f32) for (_, b) in scaling_params]
    t_ws = [w.astype(f32) for (w, _) in shifting_params]
    t_bs = [b.astype(f32) for (_, b) in shifting_params]

    # Layer 0 is always fused side-by-side: x0 @ [sw0 | tw0].
    w0 = jnp.concatenate([s_ws[0], t_ws[0]], axis=1).astype(mxu_dtype)   # (k, 2k)
    biases = jnp.stack(
        [jnp.concatenate([s_bs[i], t_bs[i]]) for i in range(3)], axis=0
    )                                                                    # (3, 2k) f32

    split_12 = _use_split_layers()
    if split_12:
        weights = (
            w0,
            s_ws[1].astype(mxu_dtype), t_ws[1].astype(mxu_dtype),
            s_ws[2].astype(mxu_dtype), t_ws[2].astype(mxu_dtype),
        )
        w_specs = [pl.BlockSpec((k, 2 * k), lambda i: (0, 0))] + \
                  [pl.BlockSpec((k, k), lambda i: (0, 0))] * 4
        kernel = _affine_coupling_kernel_split
        w_elems = k * 2 * k + 4 * k * k
        flops = 12 * B * k * k
        transcendentals = 4 * B * k
    else:
        zeros = jnp.zeros((k, k), f32)
        w1 = jnp.block([[s_ws[1], zeros], [zeros, t_ws[1]]]).astype(mxu_dtype)
        w2 = jnp.block([[s_ws[2], zeros], [zeros, t_ws[2]]]).astype(mxu_dtype)
        weights = (w0, w1, w2)
        w_specs = [pl.BlockSpec((k, 2 * k), lambda i: (0, 0)),
                   pl.BlockSpec((2 * k, 2 * k), lambda i: (0, 0)),
                   pl.BlockSpec((2 * k, 2 * k), lambda i: (0, 0))]
        kernel = _affine_coupling_kernel_fused
        w_elems = k * 2 * k + 2 * (2 * k) * (2 * k)
        flops = 20 * B * k * k
        transcendentals = 6 * B * k

    TB = _pick_batch_tile(B)
    grid = (B // TB,)

    itemsize = jnp.dtype(mxu_dtype).itemsize
    weight_bytes = w_elems * itemsize + 3 * 2 * k * 4
    tile_io_bytes = TB * (2 * D + 1) * 4
    # Double-buffered I/O tiles + resident weights, clamped well under the
    # 32 MiB scoped default (headroom on v7x's 64 MiB VMEM).
    vmem_limit = int(min(max(4 * tile_io_bytes + 2 * weight_bytes + (2 << 20),
                             8 << 20), 32 << 20))

    cost = pl.CostEstimate(
        flops=int(flops),
        transcendentals=int(transcendentals),
        bytes_accessed=int(2 * B * D * 4 + B * 4 + weight_bytes),
    )

    # TODO(synk): add pipeline_mode=pl.Buffered(3) here if profiling shows
    # exposed input DMA after the bf16 switch.
    x_spec = pl.BlockSpec((TB, D), lambda i: (i, 0))
    z_spec = pl.BlockSpec((TB, D), lambda i: (i, 0))
    ld_spec = pl.BlockSpec((TB, 1), lambda i: (i, 0))
    b_spec = pl.BlockSpec((3, 2 * k), lambda i: (0, 0))

    z, logdet = pl.pallas_call(
        kernel,
        out_shape=(
            jax.ShapeDtypeStruct((B, D), f32),
            jax.ShapeDtypeStruct((B, 1), f32),
        ),
        grid=grid,
        in_specs=[x_spec] + w_specs + [b_spec],
        out_specs=(z_spec, ld_spec),
        compiler_params=pltpu.CompilerParams(
            dimension_semantics=("parallel",),
            vmem_limit_bytes=vmem_limit,
        ),
        cost_estimate=cost,
    )(x, *weights, biases)

    return z, logdet[:, 0]


# ----------------------------- reference & test -------------------------------


def _init_linear(key, in_dim, out_dim):
    # Deterministic synthetic init mimicking PyTorch Linear's uniform(-1/sqrt(in), 1/sqrt(in)).
    kw, kb = jax.random.split(key)
    bound = 1.0 / jnp.sqrt(jnp.float32(in_dim))
    w_t = jax.random.uniform(kw, (in_dim, out_dim), jnp.float32, -bound, bound)  # (in, out) = W.T
    b = jax.random.uniform(kb, (out_dim,), jnp.float32, -bound, bound)
    return w_t, b


def _reference_forward(x, scaling_params, shifting_params, mxu_dtype=jnp.float32):
    """Pure-JAX reference.  With mxu_dtype=bf16 it mirrors the kernel's
    mixed-precision matmuls (bf16 operands, f32 accumulation) exactly."""
    k = x.shape[1] // 2
    x0, x1 = x[:, :k], x[:, k:]
    h = x0
    for (w, b) in scaling_params:
        u = jnp.dot(h.astype(mxu_dtype), w.astype(mxu_dtype),
                    preferred_element_type=jnp.float32) + b
        h = jnp.tanh(u)
    s = h
    g = x0
    for (w, b) in shifting_params:
        u = jnp.dot(g.astype(mxu_dtype), w.astype(mxu_dtype),
                    preferred_element_type=jnp.float32) + b
        g = jnp.maximum(u, 0.2 * u)
    t = g
    z1 = jnp.exp(s) * x1 + t
    return jnp.concatenate([x0, z1], axis=1), jnp.sum(s, axis=1)


if __name__ == "__main__":
    key = jax.random.PRNGKey(0)
    B, D = 128, 256          # input_dim = 256 -> k = nh = 128 (lane-aligned split)
    k = D // 2

    keys = jax.random.split(key, 7)
    x = jax.random.normal(keys[0], (B, D), jnp.float32)

    # Scaling: Linear(k, k) x3 ; Shifting: Linear(k, k) x3  (n_layers=1 default)
    scaling_params = [_init_linear(keys[1 + i], k, k) for i in range(3)]
    shifting_params = [_init_linear(keys[4 + i], k, k) for i in range(3)]

    z, log_det = affine_coupling_forward(x, scaling_params, shifting_params)
    jax.block_until_ready((z, log_det))
    assert z.shape == (B, D) and log_det.shape == (B,)

    # Tight check vs a matched-precision (bf16-operand, f32-accumulate) reference.
    z_ref, ld_ref = _reference_forward(x, scaling_params, shifting_params,
                                       mxu_dtype=jnp.bfloat16)
    assert jnp.allclose(z, z_ref, atol=2e-3, rtol=2e-3), float(
        jnp.max(jnp.abs(z - z_ref)))
    assert jnp.allclose(log_det, ld_ref, atol=2e-2, rtol=2e-3), float(
        jnp.max(jnp.abs(log_det - ld_ref)))

    # Loose sanity check vs the full-f32 reference (delta dominated by the
    # intentional bf16 MXU operands).
    z_f32, ld_f32 = _reference_forward(x, scaling_params, shifting_params,
                                       mxu_dtype=jnp.float32)
    assert float(jnp.max(jnp.abs(z - z_f32))) < 0.2, float(
        jnp.max(jnp.abs(z - z_f32)))
    assert float(jnp.max(jnp.abs(log_det - ld_f32))) < 0.5, float(
        jnp.max(jnp.abs(log_det - ld_f32)))

    print("KERNEL_OK")
</pallas_src>

<mosaic_0001>
module attributes {stable_mosaic.version = 11 : i64} {
  func.func @_affine_coupling_kernel_fused(%arg0: i32, %arg1: memref<32x256xf32, #tpu.memory_space<vmem>>, %arg2: memref<128x256xbf16, #tpu.memory_space<vmem>>, %arg3: memref<256x256xbf16, #tpu.memory_space<vmem>>, %arg4: memref<256x256xbf16, #tpu.memory_space<vmem>>, %arg5: memref<3x256xf32, #tpu.memory_space<vmem>>, %arg6: memref<32x256xf32, #tpu.memory_space<vmem>>, %arg7: memref<32x1xf32, #tpu.memory_space<vmem>>) attributes {dimension_semantics = [#tpu.dimension_semantics<parallel>], iteration_bounds = array<i64: 4>, scalar_prefetch = 0 : i64, scratch_operands = 0 : i64, tpu.core_type = #tpu.core_type<tc>, window_params = [{transform_indices = @transform_0, window_bounds = array<i64: 32, 256>}, {pipeline_mode = #tpu.pipeline_mode<synchronous>, transform_indices = @transform_1, window_bounds = array<i64: 128, 256>}, {pipeline_mode = #tpu.pipeline_mode<synchronous>, transform_indices = @transform_2, window_bounds = array<i64: 256, 256>}, {pipeline_mode = #tpu.pipeline_mode<synchronous>, transform_indices = @transform_3, window_bounds = array<i64: 256, 256>}, {pipeline_mode = #tpu.pipeline_mode<synchronous>, transform_indices = @transform_4, window_bounds = array<i64: 3, 256>}, {transform_indices = @transform_5, window_bounds = array<i64: 32, 256>}, {transform_indices = @transform_6, window_bounds = array<i64: 32, 1>}]} {
    %c0 = arith.constant 0 : index
    %c0_0 = arith.constant 0 : index
    %0 = vector.load %arg1[%c0, %c0_0] : memref<32x256xf32, #tpu.memory_space<vmem>>, vector<32x128xf32>
    %c0_1 = arith.constant 0 : index
    %c128 = arith.constant 128 : index
    %1 = vector.load %arg1[%c0_1, %c128] : memref<32x256xf32, #tpu.memory_space<vmem>>, vector<32x128xf32>
    %c0_2 = arith.constant 0 : index
    %c0_3 = arith.constant 0 : index
    %2 = vector.load %arg5[%c0_2, %c0_3] : memref<3x256xf32, #tpu.memory_space<vmem>>, vector<1x256xf32>
    %c1 = arith.constant 1 : index
    %c0_4 = arith.constant 0 : index
    %3 = vector.load %arg5[%c1, %c0_4] : memref<3x256xf32, #tpu.memory_space<vmem>>, vector<1x256xf32>
    %c2 = arith.constant 2 : index
    %c0_5 = arith.constant 0 : index
    %4 = vector.load %arg5[%c2, %c0_5] : memref<3x256xf32, #tpu.memory_space<vmem>>, vector<1x256xf32>
    %5 = tpu.iota {dimensions = array<i32: 1>} : vector<32x256xi32>
    %c128_i32 = arith.constant 128 : i32
    %6 = vector.broadcast %c128_i32 : i32 to vector<32x256xi32>
    %7 = arith.cmpi slt, %5, %6 : vector<32x256xi32>
    %8 = arith.truncf %0 : vector<32x128xf32> to vector<32x128xbf16>
    %c0_6 = arith.constant 0 : index
    %c0_7 = arith.constant 0 : index
    %9 = vector.load %arg2[%c0_6, %c0_7] : memref<128x256xbf16, #tpu.memory_space<vmem>>, vector<128x256xbf16>
    %cst = arith.constant dense<0.000000e+00> : vector<32x256xf32>
    %10 = tpu.matmul %8, %9, %cst {dimension_numbers = #tpu.dot_dimension_numbers<[1], [0], [0], [1], [0, 0, 1, 1], [], []>} : vector<32x128xbf16>, vector<128x256xbf16>, vector<32x256xf32> -> vector<32x256xf32>
    %11 = vector.broadcast %2 : vector<1x256xf32> to vector<32x256xf32>
    %12 = arith.addf %10, %11 : vector<32x256xf32>
    %13 = math.tanh %12 : vector<32x256xf32>
    %cst_8 = arith.constant 2.000000e-01 : f32
    %14 = vector.broadcast %cst_8 : f32 to vector<32x256xf32>
    %15 = arith.mulf %14, %12 : vector<32x256xf32>
    %16 = arith.maximumf %12, %15 : vector<32x256xf32>
    %17 = arith.select %7, %13, %16 : vector<32x256xi1>, vector<32x256xf32>
    %18 = arith.truncf %17 : vector<32x256xf32> to vector<32x256xbf16>
    %c0_9 = arith.constant 0 : index
    %c0_10 = arith.constant 0 : index
    %19 = vector.load %arg3[%c0_9, %c0_10] : memref<256x256xbf16, #tpu.memory_space<vmem>>, vector<256x256xbf16>
    %cst_11 = arith.constant dense<0.000000e+00> : vector<32x256xf32>
    %20 = tpu.matmul %18, %19, %cst_11 {dimension_numbers = #tpu.dot_dimension_numbers<[1], [0], [0], [1], [0, 0, 1, 1], [], []>} : vector<32x256xbf16>, vector<256x256xbf16>, vector<32x256xf32> -> vector<32x256xf32>
    %21 = vector.broadcast %3 : vector<1x256xf32> to vector<32x256xf32>
    %22 = arith.addf %20, %21 : vector<32x256xf32>
    %23 = math.tanh %22 : vector<32x256xf32>
    %cst_12 = arith.constant 2.000000e-01 : f32
    %24 = vector.broadcast %cst_12 : f32 to vector<32x256xf32>
    %25 = arith.mulf %24, %22 : vector<32x256xf32>
    %26 = arith.maximumf %22, %25 : vector<32x256xf32>
    %27 = arith.select %7, %23, %26 : vector<32x256xi1>, vector<32x256xf32>
    %28 = arith.truncf %27 : vector<32x256xf32> to vector<32x256xbf16>
    %c0_13 = arith.constant 0 : index
    %c0_14 = arith.constant 0 : index
    %29 = vector.load %arg4[%c0_13, %c0_14] : memref<256x256xbf16, #tpu.memory_space<vmem>>, vector<256x256xbf16>
    %cst_15 = arith.constant dense<0.000000e+00> : vector<32x256xf32>
    %30 = tpu.matmul %28, %29, %cst_15 {dimension_numbers = #tpu.dot_dimension_numbers<[1], [0], [0], [1], [0, 0, 1, 1], [], []>} : vector<32x256xbf16>, vector<256x256xbf16>, vector<32x256xf32> -> vector<32x256xf32>
    %31 = vector.broadcast %4 : vector<1x256xf32> to vector<32x256xf32>
    %32 = arith.addf %30, %31 : vector<32x256xf32>
    %33 = vector.extract_strided_slice %32 {offsets = [0, 0], sizes = [32, 128], strides = [1, 1]} : vector<32x256xf32> to vector<32x128xf32>
    %34 = math.tanh %33 : vector<32x128xf32>
    %35 = vector.extract_strided_slice %32 {offsets = [0, 128], sizes = [32, 128], strides = [1, 1]} : vector<32x256xf32> to vector<32x128xf32>
    %cst_16 = arith.constant 2.000000e-01 : f32
    %36 = vector.broadcast %cst_16 : f32 to vector<32x128xf32>
    %37 = arith.mulf %36, %35 : vector<32x128xf32>
    %38 = arith.maximumf %35, %37 : vector<32x128xf32>
    %c0_17 = arith.constant 0 : index
    %c0_18 = arith.constant 0 : index
    %39 = vector.load %arg6[%c0_17, %c0_18] : memref<32x256xf32, #tpu.memory_space<vmem>>, vector<32x128xf32>
    tpu.vector_store %arg6[%c0_17, %c0_18], %0 {strides = array<i32>} : memref<32x256xf32, #tpu.memory_space<vmem>>, vector<32x128xf32>,
    %40 = math.exp %34 : vector<32x128xf32>
    %41 = arith.mulf %40, %1 : vector<32x128xf32>
    %42 = arith.addf %41, %38 : vector<32x128xf32>
    %c0_19 = arith.constant 0 : index
    %c128_20 = arith.constant 128 : index
    %43 = vector.load %arg6[%c0_19, %c128_20] : memref<32x256xf32, #tpu.memory_space<vmem>>, vector<32x128xf32>
    tpu.vector_store %arg6[%c0_19, %c128_20], %42 {strides = array<i32>} : memref<32x256xf32, #tpu.memory_space<vmem>>, vector<32x128xf32>,
    %cst_21 = arith.constant dense<0.000000e+00> : vector<32xf32>
    %44 = vector.multi_reduction <add>, %34, %cst_21 [1] : vector<32x128xf32> to vector<32xf32>
    %45 = vector.shape_cast %44 : vector<32xf32> to vector<32x1xf32>
    %c0_22 = arith.constant 0 : index
    %c0_23 = arith.constant 0 : index
    %46 = vector.load %arg7[%c0_22, %c0_23] : memref<32x1xf32, #tpu.memory_space<vmem>>, vector<32x1xf32>
    tpu.vector_store %arg7[%c0_22, %c0_23], %45 {strides = array<i32>} : memref<32x1xf32, #tpu.memory_space<vmem>>, vector<32x1xf32>,
    return
  }
  func.func @transform_0(%arg0: i32) -> (i32, i32) {
    %c0_i32 = arith.constant 0 : i32
    %c0_i32_0 = arith.constant 0 : i32
    return %arg0, %c0_i32 : i32, i32
  }
  func.func @transform_1(%arg0: i32) -> (i32, i32) {
    %c0_i32 = arith.constant 0 : i32
    %c0_i32_0 = arith.constant 0 : i32
    %c0_i32_1 = arith.constant 0 : i32
    return %c0_i32, %c0_i32_0 : i32, i32
  }
  func.func @transform_2(%arg0: i32) -> (i32, i32) {
    %c0_i32 = arith.constant 0 : i32
    %c0_i32_0 = arith.constant 0 : i32
    %c0_i32_1 = arith.constant 0 : i32
    return %c0_i32, %c0_i32_0 : i32, i32
  }
  func.func @transform_3(%arg0: i32) -> (i32, i32) {
    %c0_i32 = arith.constant 0 : i32
    %c0_i32_0 = arith.constant 0 : i32
    %c0_i32_1 = arith.constant 0 : i32
    return %c0_i32, %c0_i32_0 : i32, i32
  }
  func.func @transform_4(%arg0: i32) -> (i32, i32) {
    %c0_i32 = arith.constant 0 : i32
    %c0_i32_0 = arith.constant 0 : i32
    %c0_i32_1 = arith.constant 0 : i32
    return %c0_i32, %c0_i32_0 : i32, i32
  }
  func.func @transform_5(%arg0: i32) -> (i32, i32) {
    %c0_i32 = arith.constant 0 : i32
    %c0_i32_0 = arith.constant 0 : i32
    return %arg0, %c0_i32 : i32, i32
  }
  func.func @transform_6(%arg0: i32) -> (i32, i32) {
    %c0_i32 = arith.constant 0 : i32
    %c0_i32_0 = arith.constant 0 : i32
    return %arg0, %c0_i32 : i32, i32
  }
}

</mosaic_0001>

<llo_original>
// kernel: tpu_custom_call.1
$region0: #{tpu_custom_call.1}
  #allocation0 [shape = 'u32[]', space=smem, size = 0x4, offset = 0x4, fixed_abs, tag = 'smem constant byte address 0x4 - core index']
  #allocation1 [shape = 'u32[144,128]{1,0:T(1,128)}', space=vmem, size = 0x12000, scoped, tag = 'internal scratch']
  %s0 = inlined_call_operand.hbm [shape: f32[128,256], index: 0, kind: input, shape index: {}]
  %s1 = inlined_call_operand.hbm [shape: bf16[128,256], index: 1, kind: input, shape index: {}]
  %s2 = inlined_call_operand.hbm [shape: bf16[256,256], index: 2, kind: input, shape index: {}]
  %s3 = inlined_call_operand.hbm [shape: bf16[256,256], index: 3, kind: input, shape index: {}]
  %s4 = inlined_call_operand.hbm [shape: f32[3,256], index: 4, kind: input, shape index: {}]
  %s5 = inlined_call_operand.hbm [shape: f32[128,256], index: 5, kind: output, shape index: {0}]
  %s6 = inlined_call_operand.vmem [shape: f32[128,1], index: 6, kind: output, shape index: {1}]
  %7 = xla_tuple %s5, %s6
  %s8 = sld [smem:[#allocation0]]
  $region81: #{tpu_custom_call.1} parent=0
    _
  %s10 = ssub.s32 1, %s8
  %s11 = scalar_select 0, %s10, %s8
  $region1: #{tpu_custom_call.1} parent=0
    #allocation2 [shape = 'u8[65536]{0}', space=vmem, size = 0x10000, scoped, tag = 'input window, operand 0']
    #allocation3 [shape = 's32[2]{0}', space=sflag, size = 0x8, scoped, tag = 'scoped memory for tpu_custom_call.1']
    #allocation4 [shape = 's32[2]{0}', space=sflag, size = 0x8, scoped, tag = 'scoped memory for tpu_custom_call.1']
    #allocation5 [shape = 'u8[65536]{0}', space=vmem, size = 0x10000, scoped, tag = 'input window, operand 1, single buffered']
    #allocation6 [shape = 's32[1]{0}', space=sflag, size = 0x4, scoped, tag = 'scoped memory for tpu_custom_call.1']
    #allocation7 [shape = 'u8[131072]{0}', space=vmem, size = 0x20000, scoped, tag = 'input window, operand 2, single buffered']
    #allocation8 [shape = 'u8[131072]{0}', space=vmem, size = 0x20000, scoped, tag = 'input window, operand 3, single buffered']
    #allocation9 [shape = 's32[1]{0}', space=sflag, size = 0x4, scoped, tag = 'scoped memory for tpu_custom_call.1']
    #allocation10 [shape = 'u8[4096]{0}', space=vmem, size = 0x1000, scoped, tag = 'input window, operand 4, single buffered']
    #allocation11 [shape = 'u8[65536]{0}', space=vmem, size = 0x10000, scoped, tag = 'output window, operand 0']
    %12 = vsyncpa [#allocation3], 0
    %s13 = scalar_lea.sflag [#allocation3], 1
    %14 = vsyncpa %s13, 0
    %15 = vsyncpa [#allocation6], 0
    %16 = vsyncpa [#allocation9], 0
    %17 = vsyncpa [#allocation4], 0
    %s18 = scalar_lea.sflag [#allocation4], 1
    %19 = vsyncpa %s18, 0
    loop: start=0, step=1, limit=6
    $region2: #{tpu_custom_call.1} parent=1 // loop_pre_header
      _
    $region3: #{tpu_custom_call.1} parent=1 // loop_header
      %s21 = sphi 0, %s25
      %p22 = scmp.ge.s32.totalorder %s21, 6
      %s31 = sphi 0, %s33
      %s34 = sphi 0, %s31
      %s35 = sphi 0, %s34
      %s51 = sphi 0, %s35
      %s55 = sphi 0, %s55
      %s57 = sphi 0, %s55
      %s58 = sphi 0, %s57
      %s72 = sphi 0, %s58
      %s76 = sphi 0, %s76
      %s78 = sphi 0, %s76
      %s79 = sphi 0, %s78
      %s93 = sphi 0, %s79
      %s97 = sphi 0, %s97
      %s99 = sphi 0, %s97
      %s100 = sphi 0, %s99
      %s114 = sphi 0, %s100
      %s118 = sphi 0, %s118
      %s120 = sphi 0, %s118
      %s121 = sphi 0, %s120
      %s135 = sphi 0, %s121
      %s141 = sphi 0, %s143
      %s144 = sphi 0, %s141
      %s145 = sphi 0, %s144
      %s161 = sphi 0, %s145
      %s167 = sphi 0, %s169
      %s170 = sphi 0, %s167
      %s171 = sphi 0, %s170
      %s187 = sphi 0, %s171
    $region4: #{tpu_custom_call.1} parent=1 // loop_header_branch
      %24 = sbr.rel (%p22) target = $region8
    $region5: #{tpu_custom_call.1} parent=1 // loop_body
      %s26 = ssub.s32 %s21, 1
      %s27 = ssub.s32 %s21, 2
      %s28 = sadd.s32 %s21, 1
      %s29 = ssub.s32 %s21, %s28
      %p30 = scmp.eq.s32.totalorder %s29, 0
      %s32 = sadd.s32 %s31, 1
      %s33 = scalar_select %p30, %s31, %s32
      %p36 = pneg %p30
      %p37 = scmp.eq.s32.totalorder %s21, 3
      %p38 = por %p36, %p37
      %p39 = scmp.ne.s32.totalorder %s31, %s34
      %p40 = scmp.eq.s32.totalorder %s21, 0
      %p41 = por %p39, %p40
      %p42 = scmp.ne.s32.totalorder %s31, %s34
      %p43 = scmp.eq.s32.totalorder %s26, 3
      %p44 = por %p42, %p43
      %p45 = scmp.ne.s32.totalorder %s34, %s35
      %p46 = scmp.eq.s32.totalorder %s26, 0
      %p47 = por %p45, %p46
      %p48 = scmp.ne.s32.totalorder %s34, %s35
      %p49 = scmp.eq.s32.totalorder %s27, 3
      %p50 = por %p48, %p49
      %p52 = scmp.ne.s32.totalorder %s35, %s51
      %p53 = scmp.eq.s32.totalorder %s27, 0
      %p54 = por %p52, %p53
      %s56 = sadd.s32 %s55, 1
      %p59 = scmp.eq.s32.totalorder %s21, 3
      %p60 = scmp.ne.s32.totalorder %s55, %s57
      %p61 = scmp.eq.s32.totalorder %s21, 0
      %p62 = por %p60, %p61
      %p63 = scmp.ne.s32.totalorder %s55, %s57
      %p64 = scmp.eq.s32.totalorder %s26, 3
      %p65 = por %p63, %p64
      %p66 = scmp.ne.s32.totalorder %s57, %s58
      %p67 = scmp.eq.s32.totalorder %s26, 0
      %p68 = por %p66, %p67
      %p69 = scmp.ne.s32.totalorder %s57, %s58
      %p70 = scmp.eq.s32.totalorder %s27, 3
      %p71 = por %p69, %p70
      %p73 = scmp.ne.s32.totalorder %s58, %s72
      %p74 = scmp.eq.s32.totalorder %s27, 0
      %p75 = por %p73, %p74
      %s77 = sadd.s32 %s76, 1
      %p80 = scmp.eq.s32.totalorder %s21, 3
      %p81 = scmp.ne.s32.totalorder %s76, %s78
      %p82 = scmp.eq.s32.totalorder %s21, 0
      %p83 = por %p81, %p82
      %p84 = scmp.ne.s32.totalorder %s76, %s78
      %p85 = scmp.eq.s32.totalorder %s26, 3
      %p86 = por %p84, %p85
      %p87 = scmp.ne.s32.totalorder %s78, %s79
      %p88 = scmp.eq.s32.totalorder %s26, 0
      %p89 = por %p87, %p88
      %p90 = scmp.ne.s32.totalorder %s78, %s79
      %p91 = scmp.eq.s32.totalorder %s27, 3
      %p92 = por %p90, %p91
      %p94 = scmp.ne.s32.totalorder %s79, %s93
      %p95 = scmp.eq.s32.totalorder %s27, 0
      %p96 = por %p94, %p95
      %s98 = sadd.s32 %s97, 1
      %p101 = scmp.eq.s32.totalorder %s21, 3
      %p102 = scmp.ne.s32.totalorder %s97, %s99
      %p103 = scmp.eq.s32.totalorder %s21, 0
      %p104 = por %p102, %p103
      %p105 = scmp.ne.s32.totalorder %s97, %s99
      %p106 = scmp.eq.s32.totalorder %s26, 3
      %p107 = por %p105, %p106
      %p108 = scmp.ne.s32.totalorder %s99, %s100
      %p109 = scmp.eq.s32.totalorder %s26, 0
      %p110 = por %p108, %p109
      %p111 = scmp.ne.s32.totalorder %s99, %s100
      %p112 = scmp.eq.s32.totalorder %s27, 3
      %p113 = por %p111, %p112
      %p115 = scmp.ne.s32.totalorder %s100, %s114
      %p116 = scmp.eq.s32.totalorder %s27, 0
      %p117 = por %p115, %p116
      %s119 = sadd.s32 %s118, 1
      %p122 = scmp.eq.s32.totalorder %s21, 3
      %p123 = scmp.ne.s32.totalorder %s118, %s120
      %p124 = scmp.eq.s32.totalorder %s21, 0
      %p125 = por %p123, %p124
      %p126 = scmp.ne.s32.totalorder %s118, %s120
      %p127 = scmp.eq.s32.totalorder %s26, 3
      %p128 = por %p126, %p127
      %p129 = scmp.ne.s32.totalorder %s120, %s121
      %p130 = scmp.eq.s32.totalorder %s26, 0
      %p131 = por %p129, %p130
      %p132 = scmp.ne.s32.totalorder %s120, %s121
      %p133 = scmp.eq.s32.totalorder %s27, 3
      %p134 = por %p132, %p133
      %p136 = scmp.ne.s32.totalorder %s121, %s135
      %p137 = scmp.eq.s32.totalorder %s27, 0
      %p138 = por %p136, %p137
      %s139 = ssub.s32 %s21, %s28
      %p140 = scmp.eq.s32.totalorder %s139, 0
      %s142 = sadd.s32 %s141, 1
      %s143 = scalar_select %p140, %s141, %s142
      %p146 = pneg %p140
      %p147 = scmp.eq.s32.totalorder %s21, 3
      %p148 = por %p146, %p147
      %p149 = scmp.ne.s32.totalorder %s141, %s144
      %p150 = scmp.eq.s32.totalorder %s21, 0
      %p151 = por %p149, %p150
      %p152 = scmp.ne.s32.totalorder %s141, %s144
      %p153 = scmp.eq.s32.totalorder %s26, 3
      %p154 = por %p152, %p153
      %p155 = scmp.ne.s32.totalorder %s144, %s145
      %p156 = scmp.eq.s32.totalorder %s26, 0
      %p157 = por %p155, %p156
      %p158 = scmp.ne.s32.totalorder %s144, %s145
      %p159 = scmp.eq.s32.totalorder %s27, 3
      %p160 = por %p158, %p159
      %p162 = scmp.ne.s32.totalorder %s145, %s161
      %p163 = scmp.eq.s32.totalorder %s27, 0
      %p164 = por %p162, %p163
      %s165 = ssub.s32 %s21, %s28
      %p166 = scmp.eq.s32.totalorder %s165, 0
      %s168 = sadd.s32 %s167, 1
      %s169 = scalar_select %p166, %s167, %s168
      %p172 = pneg %p166
      %p173 = scmp.eq.s32.totalorder %s21, 3
      %p174 = por %p172, %p173
      %p175 = scmp.ne.s32.totalorder %s167, %s170
      %p176 = scmp.eq.s32.totalorder %s21, 0
      %p177 = por %p175, %p176
      %p178 = scmp.ne.s32.totalorder %s167, %s170
      %p179 = scmp.eq.s32.totalorder %s26, 3
      %p180 = por %p178, %p179
      %p181 = scmp.ne.s32.totalorder %s170, %s171
      %p182 = scmp.eq.s32.totalorder %s26, 0
      %p183 = por %p181, %p182
      %p184 = scmp.ne.s32.totalorder %s170, %s171
      %p185 = scmp.eq.s32.totalorder %s27, 3
      %p186 = por %p184, %p185
      %p188 = scmp.ne.s32.totalorder %s171, %s187
      %p189 = scmp.eq.s32.totalorder %s27, 0
      %p190 = por %p188, %p189
      %p191 = scmp.le.s32.totalorder 1, %s21
      %p192 = scmp.lt.s32.totalorder %s21, 5
      %p193 = pnand %p191, %p192
      %p194 = pneg %p193
      // Predicated region
      $region9: #{tpu_custom_call.1} parent=5 // pred_check
        _
      $region10: #{tpu_custom_call.1} parent=5 // pred_check_branch
        %196 = sbr.rel (%p193) target = $region12
      $region11: #{tpu_custom_call.1} parent=5 // pred_region
        %s197 = ssub.s32 %s21, 1
        // Predicated region
        $region13: #{tpu_custom_call.1} parent=11 // pred_check
          %p198 = pneg %p68
        $region14: #{tpu_custom_call.1} parent=11 // pred_check_branch
          %200 = sbr.rel (%p198) target = $region16
        $region15: #{tpu_custom_call.1} parent=11 // pred_region
          %s202 = ssub.s32 2048, 2048
          %203 = vsyncadd [#allocation6], %s202
          %s204 = sshll.u32 [#allocation5], 4
          %s205 = int_to_ptr.vmem [resolvable:$true] %s204
          %210 = dma.hbm_to_vmem [thread:$0]  %s1, 2048, %s205, [#allocation6], 128, 128, 8
        $region16: #{tpu_custom_call.1} parent=11 // pred_fallthru
          _
        // Predicated region
        $region17: #{tpu_custom_call.1} parent=11 // pred_check
          %p211 = pneg %p89
        $region18: #{tpu_custom_call.1} parent=11 // pred_check_branch
          %213 = sbr.rel (%p211) target = $region20
        $region19: #{tpu_custom_call.1} parent=11 // pred_region
          %s215 = ssub.s32 4096, 4096
          %216 = vsyncadd [#allocation6], %s215
          %s217 = sshll.u32 [#allocation7], 4
          %s218 = int_to_ptr.vmem [resolvable:$true] %s217
          %223 = dma.hbm_to_vmem [thread:$0]  %s2, 4096, %s218, [#allocation6], 128, 128, 8
        $region20: #{tpu_custom_call.1} parent=11 // pred_fallthru
          _
        // Predicated region
        $region21: #{tpu_custom_call.1} parent=11 // pred_check
          %p224 = pneg %p110
        $region22: #{tpu_custom_call.1} parent=11 // pred_check_branch
          %226 = sbr.rel (%p224) target = $region24
        $region23: #{tpu_custom_call.1} parent=11 // pred_region
          %s228 = ssub.s32 4096, 4096
          %229 = vsyncadd [#allocation9], %s228
          %s230 = sshll.u32 [#allocation8], 4
          %s231 = int_to_ptr.vmem [resolvable:$true] %s230
          %236 = dma.hbm_to_vmem [thread:$0]  %s3, 4096, %s231, [#allocation9], 128, 128, 8
        $region24: #{tpu_custom_call.1} parent=11 // pred_fallthru
          _
        // Predicated region
        $region25: #{tpu_custom_call.1} parent=11 // pred_check
          %p237 = pneg %p131
        $region26: #{tpu_custom_call.1} parent=11 // pred_check_branch
          %239 = sbr.rel (%p237) target = $region28
        $region27: #{tpu_custom_call.1} parent=11 // pred_region
          %s241 = ssub.s32 128, 128
          %242 = vsyncadd [#allocation9], %s241
          %s244 = sshll.u32 [#allocation10], 4
          %s245 = int_to_ptr.vmem [resolvable:$true] %s244
          %247 = dma.hbm_to_vmem [thread:$0]  %s4, 128, %s245, [#allocation9]
        $region28: #{tpu_custom_call.1} parent=11 // pred_fallthru
          _
      $region12: #{tpu_custom_call.1} parent=5 // pred_fallthru
        _
      %p248 = scmp.lt.s32.totalorder %s21, 4
      // Predicated region
      $region29: #{tpu_custom_call.1} parent=5 // pred_check
        %p249 = pneg %p248
      $region30: #{tpu_custom_call.1} parent=5 // pred_check_branch
        %251 = sbr.rel (%p249) target = $region32
      $region31: #{tpu_custom_call.1} parent=5 // pred_region
        // Predicated region
        $region33: #{tpu_custom_call.1} parent=31 // pred_check
          %p252 = pneg %p41
        $region34: #{tpu_custom_call.1} parent=31 // pred_check_branch
          %254 = sbr.rel (%p252) target = $region36
        $region35: #{tpu_custom_call.1} parent=31 // pred_region
          %s255 = sand.u32 %s31, 1
          %s256 = scalar_lea.sflag [#allocation3], %s255
          %s257 = sand.u32 %s31, 1
          %s258 = smul.addr %s257, 64
          %s259 = scalar_lea.vmem [#allocation2], %s258
          %s260 = smul.u32 4, %s21
          %s262 = ssub.s32 1024, 1024
          %263 = vsyncadd %s256, %s262
          %s264 = smul.addr %s260, 2
          %s265 = smul.addr %s264, 128
          %s266 = scalar_lea.hbm %s0, %s265
          %s267 = sshll.u32 %s259, 4
          %s268 = int_to_ptr.vmem [resolvable:$true] %s267
          %273 = dma.hbm_to_vmem [thread:$0]  %s266, 1024, %s268, %s256, 256, 256, 16
        $region36: #{tpu_custom_call.1} parent=31 // pred_fallthru
          _
      $region32: #{tpu_custom_call.1} parent=5 // pred_fallthru
        _
      %p274 = scmp.le.s32.totalorder 1, %s21
      %p275 = scmp.lt.s32.totalorder %s21, 5
      %p276 = pnand %p274, %p275
      %p277 = pneg %p276
      // Predicated region
      $region37: #{tpu_custom_call.1} parent=5 // pred_check
        _
      $region38: #{tpu_custom_call.1} parent=5 // pred_check_branch
        %279 = sbr.rel (%p276) target = $region40
      $region39: #{tpu_custom_call.1} parent=5 // pred_region
        %s280 = ssub.s32 %s21, 1
        %s281 = sand.u32 %s34, 1
        %s282 = scalar_lea.sflag [#allocation3], %s281
        %s283 = sand.u32 %s34, 1
        %s284 = smul.addr %s283, 64
        %s285 = scalar_lea.vmem [#allocation2], %s284
        // Predicated region
        $region41: #{tpu_custom_call.1} parent=39 // pred_check
          %p286 = pneg %p47
        $region42: #{tpu_custom_call.1} parent=39 // pred_check_branch
          %288 = sbr.rel (%p286) target = $region44
        $region43: #{tpu_custom_call.1} parent=39 // pred_region
          %289 = dma.done %s282, 1024
        $region44: #{tpu_custom_call.1} parent=39 // pred_fallthru
          _
        // Predicated region
        $region45: #{tpu_custom_call.1} parent=39 // pred_check
          %p290 = pneg %p68
        $region46: #{tpu_custom_call.1} parent=39 // pred_check_branch
          %292 = sbr.rel (%p290) target = $region48
        $region47: #{tpu_custom_call.1} parent=39 // pred_region
          %293 = dma.done [#allocation6], 2048
        $region48: #{tpu_custom_call.1} parent=39 // pred_fallthru
          _
        // Predicated region
        $region49: #{tpu_custom_call.1} parent=39 // pred_check
          %p294 = pneg %p89
        $region50: #{tpu_custom_call.1} parent=39 // pred_check_branch
          %296 = sbr.rel (%p294) target = $region52
        $region51: #{tpu_custom_call.1} parent=39 // pred_region
          %297 = dma.done [#allocation6], 4096
        $region52: #{tpu_custom_call.1} parent=39 // pred_fallthru
          _
        // Predicated region
        $region53: #{tpu_custom_call.1} parent=39 // pred_check
          %p298 = pneg %p110
        $region54: #{tpu_custom_call.1} parent=39 // pred_check_branch
          %300 = sbr.rel (%p298) target = $region56
        $region55: #{tpu_custom_call.1} parent=39 // pred_region
          %301 = dma.done [#allocation9], 4096
        $region56: #{tpu_custom_call.1} parent=39 // pred_fallthru
          _
        // Predicated region
        $region57: #{tpu_custom_call.1} parent=39 // pred_check
          %p302 = pneg %p131
        $region58: #{tpu_custom_call.1} parent=39 // pred_check_branch
          %304 = sbr.rel (%p302) target = $region60
        $region59: #{tpu_custom_call.1} parent=39 // pred_region
          %305 = dma.done [#allocation9], 128
        $region60: #{tpu_custom_call.1} parent=39 // pred_fallthru
          _
        %s306 = sand.u32 %s34, 1
        %s307 = scalar_lea.sflag [#allocation3], %s306
        %s308 = sand.u32 %s34, 1
        %s309 = smul.addr %s308, 64
        %s310 = scalar_lea.vmem [#allocation2], %s309
        %p311 = pneg %p47
        %p312 = pneg %p44
        %p313 = pneg %p68
        %p314 = pneg %p65
        %p315 = pneg %p89
        %p316 = pneg %p86
        %p317 = pneg %p110
        %p318 = pneg %p107
        %p319 = pneg %p131
        %p320 = pneg %p128
        %p321 = pneg %p157
        %p322 = pneg %p154
        %s323 = sand.u32 %s144, 1
        %s324 = scalar_lea.sflag [#allocation4], %s323
        %s325 = sand.u32 %s144, 1
        %s326 = smul.addr %s325, 64
        %s327 = scalar_lea.vmem [#allocation11], %s326
        %p328 = pneg %p183
        %p329 = pneg %p180
        %s330 = smul.u32 4, %s26
        %p331 = scmp.lt.s32.totalorder %s330, 15
        %s332 = scalar_select %p331, %s330, 15
        %s333 = smul.addr %s332, 8
        %s334 = scalar_lea.vmem %s6, %s333
        %s335 = smul.u32 4, %s26
        %s336 = smul.u32 4, %s26
        %s337 = smul.u32 4, %s26
        %p338 = scmp.lt.s32.totalorder %s337, 15
        %s339 = scalar_select %p338, %s337, 15
        %s340 = smul.addr %s339, 8
        %s341 = scalar_lea.vmem %s6, %s340
        %s342 = smul.u32 4, %s26
        %v344 = vld [vmem:[%s285] sm:$0xff]
        %v345 = vld [vmem:[%s285 + $0x10] sm:$0xff]
        %v346 = vld [vmem:[%s285 + $0x20] sm:$0xff]
        %v347 = vld [vmem:[%s285 + $0x30] sm:$0xff]
        %v348 = vld [vmem:[%s285 + $0x8] sm:$0xff]
        %v349 = vld [vmem:[%s285 + $0x18] sm:$0xff]
        %v350 = vld [vmem:[%s285 + $0x28] sm:$0xff]
        %v351 = vld [vmem:[%s285 + $0x38] sm:$0xff]
        %v352 = vld [vmem:[#allocation10] ss:$4 sm:$0x3]
        %s353 = scalar_lea.vmem [#allocation10], 1
        %v354 = vld [vmem:[%s353] ss:$4 sm:$0x3]
        %s355 = scalar_lea.vmem [#allocation10], 2
        %v356 = vld [vmem:[%s355] ss:$4 sm:$0x3]
        %v357 = vlaneseq
        %v358 = vand.u32 %v357, 127
        %v359 = vadd.s32 %v358, 128
        %vm360 = vcmp.lt.s32.totalorder %v358, 128
        %vm361 = vcmp.lt.s32.totalorder %v359, 128
        %v362 = vpack.c.bf16 %v345, %v344
        %v363 = vpack.c.bf16 %v347, %v346
        %v364 = vld [vmem:[#allocation5] sm:$0xff]
        %v365 = vld [vmem:[#allocation5 + $0x8] sm:$0xff]
        %v366 = vld [vmem:[#allocation5 + $0x10] sm:$0xff]
        %v367 = vld [vmem:[#allocation5 + $0x18] sm:$0xff]
        %v368 = vld [vmem:[#allocation5 + $0x20] sm:$0xff]
        %v369 = vld [vmem:[#allocation5 + $0x28] sm:$0xff]
        %v370 = vld [vmem:[#allocation5 + $0x30] sm:$0xff]
        %v371 = vld [vmem:[#allocation5 + $0x38] sm:$0xff]
        %v372 = vld [vmem:[#allocation5 + $0x40] sm:$0xff]
        %v373 = vld [vmem:[#allocation5 + $0x48] sm:$0xff]
        %v374 = vld [vmem:[#allocation5 + $0x50] sm:$0xff]
        %v375 = vld [vmem:[#allocation5 + $0x58] sm:$0xff]
        %v376 = vld [vmem:[#allocation5 + $0x60] sm:$0xff]
        %v377 = vld [vmem:[#allocation5 + $0x68] sm:$0xff]
        %v378 = vld [vmem:[#allocation5 + $0x70] sm:$0xff]
        %v379 = vld [vmem:[#allocation5 + $0x78] sm:$0xff]
        %v381 = vlaneseq
        %v382 = vshrl.u32 %v381, 7
        %v383 = vsub.s32 0, %v382
        %v384 = vrot.slane %v352, %v383
        %v385 = vlaneseq
        %v386 = vshrl.u32 %v385, 7
        %v387 = vsub.s32 1, %v386
        %v388 = vrot.slane %v352, %v387
        %v407 = vunpack.c.l.b16 %v364
        %v408 = vunpack.c.h.b16 %v364
        %v409 = vunpack.c.l.b16 %v365
        %v410 = vunpack.c.h.b16 %v365
        %v411 = vunpack.c.l.b16 %v366
        %v412 = vunpack.c.h.b16 %v366
        %v413 = vunpack.c.l.b16 %v367
        %v414 = vunpack.c.h.b16 %v367
        %v415 = vunpack.c.l.b16 %v368
        %v416 = vunpack.c.h.b16 %v368
        %v417 = vunpack.c.l.b16 %v369
        %v418 = vunpack.c.h.b16 %v369
        %v419 = vunpack.c.l.b16 %v370
        %v420 = vunpack.c.h.b16 %v370
        %v421 = vunpack.c.l.b16 %v371
        %v422 = vunpack.c.h.b16 %v371
        %v423 = vunpack.c.l.b16 %v372
        %v424 = vunpack.c.h.b16 %v372
        %v425 = vunpack.c.l.b16 %v373
        %v426 = vunpack.c.h.b16 %v373
        %v427 = vunpack.c.l.b16 %v374
        %v428 = vunpack.c.h.b16 %v374
        %v429 = vunpack.c.l.b16 %v375
        %v430 = vunpack.c.h.b16 %v375
        %v431 = vunpack.c.l.b16 %v376
        %v432 = vunpack.c.h.b16 %v376
        %v433 = vunpack.c.l.b16 %v377
        %v434 = vunpack.c.h.b16 %v377
        %v435 = vunpack.c.l.b16 %v378
        %v436 = vunpack.c.h.b16 %v378
        %v437 = vunpack.c.l.b16 %v379
        %v438 = vunpack.c.h.b16 %v379
        %v439 = vpack.c.b16 %v409, %v407
        %v440 = vpack.c.b16 %v410, %v408
        %v441 = vpack.c.b16 %v413, %v411
        %v442 = vpack.c.b16 %v414, %v412
        %v443 = vpack.c.b16 %v417, %v415
        %v444 = vpack.c.b16 %v418, %v416
        %v445 = vpack.c.b16 %v421, %v419
        %v446 = vpack.c.b16 %v422, %v420
        %v447 = vpack.c.b16 %v425, %v423
        %v448 = vpack.c.b16 %v426, %v424
        %v449 = vpack.c.b16 %v429, %v427
        %v450 = vpack.c.b16 %v430, %v428
        %v451 = vpack.c.b16 %v433, %v431
        %v452 = vpack.c.b16 %v434, %v432
        %v453 = vpack.c.b16 %v437, %v435
        %v454 = vpack.c.b16 %v438, %v436
        %471 = vmatprep.subr.bf16.mxu0 %v454
        %472 = vmatpush1.bf16.msra.mxu0 %v453
        %473 = vmatprep.subr.bf16.mxu0 %v452
        %474 = vmatpush1.bf16.msra.mxu0 %v451
        %475 = vmatprep.subr.bf16.mxu0 %v450
        %476 = vmatpush1.bf16.msra.mxu0 %v449
        %477 = vmatprep.subr.bf16.mxu0 %v448
        %478 = vmatpush1.bf16.msra.mxu0 %v447
        %479 = vmatprep.subr.bf16.mxu0 %v446
        %480 = vmatpush1.bf16.msra.mxu0 %v445
        %481 = vmatprep.subr.bf16.mxu0 %v444
        %482 = vmatpush1.bf16.msra.mxu0 %v443
        %483 = vmatprep.subr.bf16.mxu0 %v442
        %484 = vmatpush1.bf16.msra.mxu0 %v441
        %485 = vmatprep.subr.bf16.mxu0 %v440
        %486 = vmatpush1.bf16.msra.mxu0 %v439
        %487 = vmatprep.subr.bf16.mxu0 0
        %488 = vmatpush2.bf16.msra.mxu0 0
        %489 = vmatprep.subr.bf16.mxu0 0
        %490 = vmatpush2.bf16.msra.mxu0 0
        %491 = vmatprep.subr.bf16.mxu0 0
        %492 = vmatpush2.bf16.msra.mxu0 0
        %493 = vmatprep.subr.bf16.mxu0 0
        %494 = vmatpush2.bf16.msra.mxu0 0
        %495 = vmatprep.subr.bf16.mxu0 0
        %496 = vmatpush2.bf16.msra.mxu0 0
        %497 = vmatprep.subr.bf16.mxu0 0
        %498 = vmatpush2.bf16.msra.mxu0 0
        %499 = vmatprep.subr.bf16.mxu0 0
        %500 = vmatpush2.bf16.msra.mxu0 0
        %501 = vmatprep.subr.bf16.mxu0 0
        %502 = vmatpush2.bf16.msra.mxu0 0
        %503 = vmatprep.mubr.bf16.mxu0 0
        %504 = vmatmul.mubr.bf16.gmra.mxu0 %v362
        %v505 = vpop.f32.mrf.mxu0
        %v506 = vadd.f32 %v384, %v505
        %v507 = vpop.f32.mrf.mxu0
        %v508 = vadd.f32 %v388, %v507
        %v509 = vpop.f32.mrf.mxu0
        %v510 = vadd.f32 %v384, %v509
        %v511 = vpop.f32.mrf.mxu0
        %v512 = vadd.f32 %v388, %v511
        %513 = vmatprep.mubr.bf16.mxu0 0
        %514 = vmatmul.mubr.bf16.gmra.mxu0 %v363
        %v515 = vpop.f32.mrf.mxu0
        %v516 = vadd.f32 %v384, %v515
        %v517 = vpop.f32.mrf.mxu0
        %v518 = vadd.f32 %v388, %v517
        %v519 = vpop.f32.mrf.mxu0
        %v520 = vadd.f32 %v384, %v519
        %v521 = vpop.f32.mrf.mxu0
        %v522 = vadd.f32 %v388, %v521
        %523 = vdwg.mxu0
        %v524 = vtanh.pop %v506
        %v525 = vtanh.pop %v508
        %v526 = vtanh.pop %v510
        %v527 = vtanh.pop %v512
        %v528 = vtanh.pop %v516
        %v529 = vtanh.pop %v518
        %v530 = vtanh.pop %v520
        %v531 = vtanh.pop %v522
        %v532 = vmul.f32 %v506, 0.2
        %v533 = vmul.f32 %v508, 0.2
        %v534 = vmul.f32 %v510, 0.2
        %v535 = vmul.f32 %v512, 0.2
        %v536 = vmul.f32 %v516, 0.2
        %v537 = vmul.f32 %v518, 0.2
        %v538 = vmul.f32 %v520, 0.2
        %v539 = vmul.f32 %v522, 0.2
        %v540 = vmax.f32 %v506, %v532
        %v541 = vmax.f32 %v508, %v533
        %v542 = vmax.f32 %v510, %v534
        %v543 = vmax.f32 %v512, %v535
        %v544 = vmax.f32 %v516, %v536
        %v545 = vmax.f32 %v518, %v537
        %v546 = vmax.f32 %v520, %v538
        %v547 = vmax.f32 %v522, %v539
        %v548 = vsel %vm360, %v524, %v540
        %v549 = vsel %vm361, %v525, %v541
        %v550 = vsel %vm360, %v526, %v542
        %v551 = vsel %vm361, %v527, %v543
        %v552 = vsel %vm360, %v528, %v544
        %v553 = vsel %vm361, %v529, %v545
        %v554 = vsel %vm360, %v530, %v546
        %v555 = vsel %vm361, %v531, %v547
        %v556 = vpack.c.bf16 %v550, %v548
        %v557 = vpack.c.bf16 %v551, %v549
        %v558 = vpack.c.bf16 %v554, %v552
        %v559 = vpack.c.bf16 %v555, %v553
        %v560 = vld [vmem:[#allocation7] sm:$0xff]
        %v561 = vld [vmem:[#allocation7 + $0x8] sm:$0xff]
        %v562 = vld [vmem:[#allocation7 + $0x10] sm:$0xff]
        %v563 = vld [vmem:[#allocation7 + $0x18] sm:$0xff]
        %v564 = vld [vmem:[#allocation7 + $0x20] sm:$0xff]
        %v565 = vld [vmem:[#allocation7 + $0x28] sm:$0xff]
        %v566 = vld [vmem:[#allocation7 + $0x30] sm:$0xff]
        %v567 = vld [vmem:[#allocation7 + $0x38] sm:$0xff]
        %v568 = vld [vmem:[#allocation7 + $0x40] sm:$0xff]
        %v569 = vld [vmem:[#allocation7 + $0x48] sm:$0xff]
        %v570 = vld [vmem:[#allocation7 + $0x50] sm:$0xff]
        %v571 = vld [vmem:[#allocation7 + $0x58] sm:$0xff]
        %v572 = vld [vmem:[#allocation7 + $0x60] sm:$0xff]
        %v573 = vld [vmem:[#allocation7 + $0x68] sm:$0xff]
        %v574 = vld [vmem:[#allocation7 + $0x70] sm:$0xff]
        %v575 = vld [vmem:[#allocation7 + $0x78] sm:$0xff]
        %v576 = vld [vmem:[#allocation7 + $0x80] sm:$0xff]
        %v577 = vld [vmem:[#allocation7 + $0x88] sm:$0xff]
        %v578 = vld [vmem:[#allocation7 + $0x90] sm:$0xff]
        %v579 = vld [vmem:[#allocation7 + $0x98] sm:$0xff]
        %v580 = vld [vmem:[#allocation7 + $0xa0] sm:$0xff]
        %v581 = vld [vmem:[#allocation7 + $0xa8] sm:$0xff]
        %v582 = vld [vmem:[#allocation7 + $0xb0] sm:$0xff]
        %v583 = vld [vmem:[#allocation7 + $0xb8] sm:$0xff]
        %v584 = vld [vmem:[#allocation7 + $0xc0] sm:$0xff]
        %v585 = vld [vmem:[#allocation7 + $0xc8] sm:$0xff]
        %v586 = vld [vmem:[#allocation7 + $0xd0] sm:$0xff]
        %v587 = vld [vmem:[#allocation7 + $0xd8] sm:$0xff]
        %v588 = vld [vmem:[#allocation7 + $0xe0] sm:$0xff]
        %v589 = vld [vmem:[#allocation7 + $0xe8] sm:$0xff]
        %v590 = vld [vmem:[#allocation7 + $0xf0] sm:$0xff]
        %v591 = vld [vmem:[#allocation7 + $0xf8] sm:$0xff]
        %v593 = vlaneseq
        %v594 = vshrl.u32 %v593, 7
        %v595 = vsub.s32 0, %v594
        %v596 = vrot.slane %v354, %v595
        %v597 = vlaneseq
        %v598 = vshrl.u32 %v597, 7
        %v599 = vsub.s32 1, %v598
        %v600 = vrot.slane %v354, %v599
        %v635 = vunpack.c.l.b16 %v560
        %v636 = vunpack.c.h.b16 %v560
        %v637 = vunpack.c.l.b16 %v561
        %v638 = vunpack.c.h.b16 %v561
        %v639 = vunpack.c.l.b16 %v562
        %v640 = vunpack.c.h.b16 %v562
        %v641 = vunpack.c.l.b16 %v563
        %v642 = vunpack.c.h.b16 %v563
        %v643 = vunpack.c.l.b16 %v564
        %v644 = vunpack.c.h.b16 %v564
        %v645 = vunpack.c.l.b16 %v565
        %v646 = vunpack.c.h.b16 %v565
        %v647 = vunpack.c.l.b16 %v566
        %v648 = vunpack.c.h.b16 %v566
        %v649 = vunpack.c.l.b16 %v567
        %v650 = vunpack.c.h.b16 %v567
        %v651 = vunpack.c.l.b16 %v568
        %v652 = vunpack.c.h.b16 %v568
        %v653 = vunpack.c.l.b16 %v569
        %v654 = vunpack.c.h.b16 %v569
        %v655 = vunpack.c.l.b16 %v570
        %v656 = vunpack.c.h.b16 %v570
        %v657 = vunpack.c.l.b16 %v571
        %v658 = vunpack.c.h.b16 %v571
        %v659 = vunpack.c.l.b16 %v572
        %v660 = vunpack.c.h.b16 %v572
        %v661 = vunpack.c.l.b16 %v573
        %v662 = vunpack.c.h.b16 %v573
        %v663 = vunpack.c.l.b16 %v574
        %v664 = vunpack.c.h.b16 %v574
        %v665 = vunpack.c.l.b16 %v575
        %v666 = vunpack.c.h.b16 %v575
        %v667 = vunpack.c.l.b16 %v576
        %v668 = vunpack.c.h.b16 %v576
        %v669 = vunpack.c.l.b16 %v577
        %v670 = vunpack.c.h.b16 %v577
        %v671 = vunpack.c.l.b16 %v578
        %v672 = vunpack.c.h.b16 %v578
        %v673 = vunpack.c.l.b16 %v579
        %v674 = vunpack.c.h.b16 %v579
        %v675 = vunpack.c.l.b16 %v580
        %v676 = vunpack.c.h.b16 %v580
        %v677 = vunpack.c.l.b16 %v581
        %v678 = vunpack.c.h.b16 %v581
        %v679 = vunpack.c.l.b16 %v582
        %v680 = vunpack.c.h.b16 %v582
        %v681 = vunpack.c.l.b16 %v583
        %v682 = vunpack.c.h.b16 %v583
        %v683 = vunpack.c.l.b16 %v584
        %v684 = vunpack.c.h.b16 %v584
        %v685 = vunpack.c.l.b16 %v585
        %v686 = vunpack.c.h.b16 %v585
        %v687 = vunpack.c.l.b16 %v586
        %v688 = vunpack.c.h.b16 %v586
        %v689 = vunpack.c.l.b16 %v587
        %v690 = vunpack.c.h.b16 %v587
        %v691 = vunpack.c.l.b16 %v588
        %v692 = vunpack.c.h.b16 %v588
        %v693 = vunpack.c.l.b16 %v589
        %v694 = vunpack.c.h.b16 %v589
        %v695 = vunpack.c.l.b16 %v590
        %v696 = vunpack.c.h.b16 %v590
        %v697 = vunpack.c.l.b16 %v591
        %v698 = vunpack.c.h.b16 %v591
        %v699 = vpack.c.b16 %v637, %v635
        %v700 = vpack.c.b16 %v638, %v636
        %v701 = vpack.c.b16 %v641, %v639
        %v702 = vpack.c.b16 %v642, %v640
        %v703 = vpack.c.b16 %v645, %v643
        %v704 = vpack.c.b16 %v646, %v644
        %v705 = vpack.c.b16 %v649, %v647
        %v706 = vpack.c.b16 %v650, %v648
        %v707 = vpack.c.b16 %v653, %v651
        %v708 = vpack.c.b16 %v654, %v652
        %v709 = vpack.c.b16 %v657, %v655
        %v710 = vpack.c.b16 %v658, %v656
        %v711 = vpack.c.b16 %v661, %v659
        %v712 = vpack.c.b16 %v662, %v660
        %v713 = vpack.c.b16 %v665, %v663
        %v714 = vpack.c.b16 %v666, %v664
        %v715 = vpack.c.b16 %v669, %v667
        %v716 = vpack.c.b16 %v670, %v668
        %v717 = vpack.c.b16 %v673, %v671
        %v718 = vpack.c.b16 %v674, %v672
        %v719 = vpack.c.b16 %v677, %v675
        %v720 = vpack.c.b16 %v678, %v676
        %v721 = vpack.c.b16 %v681, %v679
        %v722 = vpack.c.b16 %v682, %v680
        %v723 = vpack.c.b16 %v685, %v683
        %v724 = vpack.c.b16 %v686, %v684
        %v725 = vpack.c.b16 %v689, %v687
        %v726 = vpack.c.b16 %v690, %v688
        %v727 = vpack.c.b16 %v693, %v691
        %v728 = vpack.c.b16 %v694, %v692
        %v729 = vpack.c.b16 %v697, %v695
        %v730 = vpack.c.b16 %v698, %v696
        %763 = vmatprep.subr.bf16.mxu0 %v714
        %764 = vmatpush1.bf16.msra.mxu0 %v713
        %765 = vmatprep.subr.bf16.mxu0 %v712
        %766 = vmatpush1.bf16.msra.mxu0 %v711
        %767 = vmatprep.subr.bf16.mxu0 %v710
        %768 = vmatpush1.bf16.msra.mxu0 %v709
        %769 = vmatprep.subr.bf16.mxu0 %v708
        %770 = vmatpush1.bf16.msra.mxu0 %v707
        %771 = vmatprep.subr.bf16.mxu0 %v706
        %772 = vmatpush1.bf16.msra.mxu0 %v705
        %773 = vmatprep.subr.bf16.mxu0 %v704
        %774 = vmatpush1.bf16.msra.mxu0 %v703
        %775 = vmatprep.subr.bf16.mxu0 %v702
        %776 = vmatpush1.bf16.msra.mxu0 %v701
        %777 = vmatprep.subr.bf16.mxu0 %v700
        %778 = vmatpush1.bf16.msra.mxu0 %v699
        %779 = vmatprep.subr.bf16.mxu0 %v730
        %780 = vmatpush2.bf16.msra.mxu0 %v729
        %781 = vmatprep.subr.bf16.mxu0 %v728
        %782 = vmatpush2.bf16.msra.mxu0 %v727
        %783 = vmatprep.subr.bf16.mxu0 %v726
        %784 = vmatpush2.bf16.msra.mxu0 %v725
        %785 = vmatprep.subr.bf16.mxu0 %v724
        %786 = vmatpush2.bf16.msra.mxu0 %v723
        %787 = vmatprep.subr.bf16.mxu0 %v722
        %788 = vmatpush2.bf16.msra.mxu0 %v721
        %789 = vmatprep.subr.bf16.mxu0 %v720
        %790 = vmatpush2.bf16.msra.mxu0 %v719
        %791 = vmatprep.subr.bf16.mxu0 %v718
        %792 = vmatpush2.bf16.msra.mxu0 %v717
        %793 = vmatprep.subr.bf16.mxu0 %v716
        %794 = vmatpush2.bf16.msra.mxu0 %v715
        %795 = vmatprep.mubr.bf16.mxu0 %v557
        %796 = vmatmul.mubr.bf16.gmra.mxu0 %v556
        %v797 = vpop.f32.mrf.mxu0
        %v798 = vadd.f32 %v596, %v797
        %v799 = vpop.f32.mrf.mxu0
        %v800 = vadd.f32 %v600, %v799
        %v801 = vpop.f32.mrf.mxu0
        %v802 = vadd.f32 %v596, %v801
        %v803 = vpop.f32.mrf.mxu0
        %v804 = vadd.f32 %v600, %v803
        %805 = vmatprep.mubr.bf16.mxu0 %v559
        %806 = vmatmul.mubr.bf16.gmra.mxu0 %v558
        %v807 = vpop.f32.mrf.mxu0
        %v808 = vadd.f32 %v596, %v807
        %v809 = vpop.f32.mrf.mxu0
        %v810 = vadd.f32 %v600, %v809
        %v811 = vpop.f32.mrf.mxu0
        %v812 = vadd.f32 %v596, %v811
        %v813 = vpop.f32.mrf.mxu0
        %v814 = vadd.f32 %v600, %v813
        %815 = vdwg.mxu0
        %v816 = vtanh.pop %v798
        %v817 = vtanh.pop %v800
        %v818 = vtanh.pop %v802
        %v819 = vtanh.pop %v804
        %v820 = vtanh.pop %v808
        %v821 = vtanh.pop %v810
        %v822 = vtanh.pop %v812
        %v823 = vtanh.pop %v814
        %v824 = vmul.f32 %v798, 0.2
        %v825 = vmul.f32 %v800, 0.2
        %v826 = vmul.f32 %v802, 0.2
        %v827 = vmul.f32 %v804, 0.2
        %v828 = vmul.f32 %v808, 0.2
        %v829 = vmul.f32 %v810, 0.2
        %v830 = vmul.f32 %v812, 0.2
        %v831 = vmul.f32 %v814, 0.2
        %v832 = vmax.f32 %v798, %v824
        %v833 = vmax.f32 %v800, %v825
        %v834 = vmax.f32 %v802, %v826
        %v835 = vmax.f32 %v804, %v827
        %v836 = vmax.f32 %v808, %v828
        %v837 = vmax.f32 %v810, %v829
        %v838 = vmax.f32 %v812, %v830
        %v839 = vmax.f32 %v814, %v831
        %v840 = vsel %vm360, %v816, %v832
        %v841 = vsel %vm361, %v817, %v833
        %v842 = vsel %vm360, %v818, %v834
        %v843 = vsel %vm361, %v819, %v835
        %v844 = vsel %vm360, %v820, %v836
        %v845 = vsel %vm361, %v821, %v837
        %v846 = vsel %vm360, %v822, %v838
        %v847 = vsel %vm361, %v823, %v839
        %v848 = vpack.c.bf16 %v842, %v840
        %v849 = vpack.c.bf16 %v843, %v841
        %v850 = vpack.c.bf16 %v846, %v844
        %v851 = vpack.c.bf16 %v847, %v845
        %v852 = vld [vmem:[#allocation8] sm:$0xff]
        %v853 = vld [vmem:[#allocation8 + $0x8] sm:$0xff]
        %v854 = vld [vmem:[#allocation8 + $0x10] sm:$0xff]
        %v855 = vld [vmem:[#allocation8 + $0x18] sm:$0xff]
        %v856 = vld [vmem:[#allocation8 + $0x20] sm:$0xff]
        %v857 = vld [vmem:[#allocation8 + $0x28] sm:$0xff]
        %v858 = vld [vmem:[#allocation8 + $0x30] sm:$0xff]
        %v859 = vld [vmem:[#allocation8 + $0x38] sm:$0xff]
        %v860 = vld [vmem:[#allocation8 + $0x40] sm:$0xff]
        %v861 = vld [vmem:[#allocation8 + $0x48] sm:$0xff]
        %v862 = vld [vmem:[#allocation8 + $0x50] sm:$0xff]
        %v863 = vld [vmem:[#allocation8 + $0x58] sm:$0xff]
        %v864 = vld [vmem:[#allocation8 + $0x60] sm:$0xff]
        %v865 = vld [vmem:[#allocation8 + $0x68] sm:$0xff]
        %v866 = vld [vmem:[#allocation8 + $0x70] sm:$0xff]
        %v867 = vld [vmem:[#allocation8 + $0x78] sm:$0xff]
        %v868 = vld [vmem:[#allocation8 + $0x80] sm:$0xff]
        %v869 = vld [vmem:[#allocation8 + $0x88] sm:$0xff]
        %v870 = vld [vmem:[#allocation8 + $0x90] sm:$0xff]
        %v871 = vld [vmem:[#allocation8 + $0x98] sm:$0xff]
        %v872 = vld [vmem:[#allocation8 + $0xa0] sm:$0xff]
        %v873 = vld [vmem:[#allocation8 + $0xa8] sm:$0xff]
        %v874 = vld [vmem:[#allocation8 + $0xb0] sm:$0xff]
        %v875 = vld [vmem:[#allocation8 + $0xb8] sm:$0xff]
        %v876 = vld [vmem:[#allocation8 + $0xc0] sm:$0xff]
        %v877 = vld [vmem:[#allocation8 + $0xc8] sm:$0xff]
        %v878 = vld [vmem:[#allocation8 + $0xd0] sm:$0xff]
        %v879 = vld [vmem:[#allocation8 + $0xd8] sm:$0xff]
        %v880 = vld [vmem:[#allocation8 + $0xe0] sm:$0xff]
        %v881 = vld [vmem:[#allocation8 + $0xe8] sm:$0xff]
        %v882 = vld [vmem:[#allocation8 + $0xf0] sm:$0xff]
        %v883 = vld [vmem:[#allocation8 + $0xf8] sm:$0xff]
        %v885 = vlaneseq
        %v886 = vshrl.u32 %v885, 7
        %v887 = vsub.s32 0, %v886
        %v888 = vrot.slane %v356, %v887
        %v889 = vlaneseq
        %v890 = vshrl.u32 %v889, 7
        %v891 = vsub.s32 1, %v890
        %v892 = vrot.slane %v356, %v891
        %v927 = vunpack.c.l.b16 %v852
        %v928 = vunpack.c.h.b16 %v852
        %v929 = vunpack.c.l.b16 %v853
        %v930 = vunpack.c.h.b16 %v853
        %v931 = vunpack.c.l.b16 %v854
        %v932 = vunpack.c.h.b16 %v854
        %v933 = vunpack.c.l.b16 %v855
        %v934 = vunpack.c.h.b16 %v855
        %v935 = vunpack.c.l.b16 %v856
        %v936 = vunpack.c.h.b16 %v856
        %v937 = vunpack.c.l.b16 %v857
        %v938 = vunpack.c.h.b16 %v857
        %v939 = vunpack.c.l.b16 %v858
        %v940 = vunpack.c.h.b16 %v858
        %v941 = vunpack.c.l.b16 %v859
        %v942 = vunpack.c.h.b16 %v859
        %v943 = vunpack.c.l.b16 %v860
        %v944 = vunpack.c.h.b16 %v860
        %v945 = vunpack.c.l.b16 %v861
        %v946 = vunpack.c.h.b16 %v861
        %v947 = vunpack.c.l.b16 %v862
        %v948 = vunpack.c.h.b16 %v862
        %v949 = vunpack.c.l.b16 %v863
        %v950 = vunpack.c.h.b16 %v863
        %v951 = vunpack.c.l.b16 %v864
        %v952 = vunpack.c.h.b16 %v864
        %v953 = vunpack.c.l.b16 %v865
        %v954 = vunpack.c.h.b16 %v865
        %v955 = vunpack.c.l.b16 %v866
        %v956 = vunpack.c.h.b16 %v866
        %v957 = vunpack.c.l.b16 %v867
        %v958 = vunpack.c.h.b16 %v867
        %v959 = vunpack.c.l.b16 %v868
        %v960 = vunpack.c.h.b16 %v868
        %v961 = vunpack.c.l.b16 %v869
        %v962 = vunpack.c.h.b16 %v869
        %v963 = vunpack.c.l.b16 %v870
        %v964 = vunpack.c.h.b16 %v870
        %v965 = vunpack.c.l.b16 %v871
        %v966 = vunpack.c.h.b16 %v871
        %v967 = vunpack.c.l.b16 %v872
        %v968 = vunpack.c.h.b16 %v872
        %v969 = vunpack.c.l.b16 %v873
        %v970 = vunpack.c.h.b16 %v873
        %v971 = vunpack.c.l.b16 %v874
        %v972 = vunpack.c.h.b16 %v874
        %v973 = vunpack.c.l.b16 %v875
        %v974 = vunpack.c.h.b16 %v875
        %v975 = vunpack.c.l.b16 %v876
        %v976 = vunpack.c.h.b16 %v876
        %v977 = vunpack.c.l.b16 %v877
        %v978 = vunpack.c.h.b16 %v877
        %v979 = vunpack.c.l.b16 %v878
        %v980 = vunpack.c.h.b16 %v878
        %v981 = vunpack.c.l.b16 %v879
        %v982 = vunpack.c.h.b16 %v879
        %v983 = vunpack.c.l.b16 %v880
        %v984 = vunpack.c.h.b16 %v880
        %v985 = vunpack.c.l.b16 %v881
        %v986 = vunpack.c.h.b16 %v881
        %v987 = vunpack.c.l.b16 %v882
        %v988 = vunpack.c.h.b16 %v882
        %v989 = vunpack.c.l.b16 %v883
        %v990 = vunpack.c.h.b16 %v883
        %v991 = vpack.c.b16 %v929, %v927
        %v992 = vpack.c.b16 %v930, %v928
        %v993 = vpack.c.b16 %v933, %v931
        %v994 = vpack.c.b16 %v934, %v932
        %v995 = vpack.c.b16 %v937, %v935
        %v996 = vpack.c.b16 %v938, %v936
        %v997 = vpack.c.b16 %v941, %v939
        %v998 = vpack.c.b16 %v942, %v940
        %v999 = vpack.c.b16 %v945, %v943
        %v1000 = vpack.c.b16 %v946, %v944
        %v1001 = vpack.c.b16 %v949, %v947
        %v1002 = vpack.c.b16 %v950, %v948
        %v1003 = vpack.c.b16 %v953, %v951
        %v1004 = vpack.c.b16 %v954, %v952
        %v1005 = vpack.c.b16 %v957, %v955
        %v1006 = vpack.c.b16 %v958, %v956
        %v1007 = vpack.c.b16 %v961, %v959
        %v1008 = vpack.c.b16 %v962, %v960
        %v1009 = vpack.c.b16 %v965, %v963
        %v1010 = vpack.c.b16 %v966, %v964
        %v1011 = vpack.c.b16 %v969, %v967
        %v1012 = vpack.c.b16 %v970, %v968
        %v1013 = vpack.c.b16 %v973, %v971
        %v1014 = vpack.c.b16 %v974, %v972
        %v1015 = vpack.c.b16 %v977, %v975
        %v1016 = vpack.c.b16 %v978, %v976
        %v1017 = vpack.c.b16 %v981, %v979
        %v1018 = vpack.c.b16 %v982, %v980
        %v1019 = vpack.c.b16 %v985, %v983
        %v1020 = vpack.c.b16 %v986, %v984
        %v1021 = vpack.c.b16 %v989, %v987
        %v1022 = vpack.c.b16 %v990, %v988
        %1055 = vmatprep.subr.bf16.mxu0 %v1006
        %1056 = vmatpush1.bf16.msra.mxu0 %v1005
        %1057 = vmatprep.subr.bf16.mxu0 %v1004
        %1058 = vmatpush1.bf16.msra.mxu0 %v1003
        %1059 = vmatprep.subr.bf16.mxu0 %v1002
        %1060 = vmatpush1.bf16.msra.mxu0 %v1001
        %1061 = vmatprep.subr.bf16.mxu0 %v1000
        %1062 = vmatpush1.bf16.msra.mxu0 %v999
        %1063 = vmatprep.subr.bf16.mxu0 %v998
        %1064 = vmatpush1.bf16.msra.mxu0 %v997
        %1065 = vmatprep.subr.bf16.mxu0 %v996
        %1066 = vmatpush1.bf16.msra.mxu0 %v995
        %1067 = vmatprep.subr.bf16.mxu0 %v994
        %1068 = vmatpush1.bf16.msra.mxu0 %v993
        %1069 = vmatprep.subr.bf16.mxu0 %v992
        %1070 = vmatpush1.bf16.msra.mxu0 %v991
        %1071 = vmatprep.subr.bf16.mxu0 %v1022
        %1072 = vmatpush2.bf16.msra.mxu0 %v1021
        %1073 = vmatprep.subr.bf16.mxu0 %v1020
        %1074 = vmatpush2.bf16.msra.mxu0 %v1019
        %1075 = vmatprep.subr.bf16.mxu0 %v1018
        %1076 = vmatpush2.bf16.msra.mxu0 %v1017
        %1077 = vmatprep.subr.bf16.mxu0 %v1016
        %1078 = vmatpush2.bf16.msra.mxu0 %v1015
        %1079 = vmatprep.subr.bf16.mxu0 %v1014
        %1080 = vmatpush2.bf16.msra.mxu0 %v1013
        %1081 = vmatprep.subr.bf16.mxu0 %v1012
        %1082 = vmatpush2.bf16.msra.mxu0 %v1011
        %1083 = vmatprep.subr.bf16.mxu0 %v1010
        %1084 = vmatpush2.bf16.msra.mxu0 %v1009
        %1085 = vmatprep.subr.bf16.mxu0 %v1008
        %1086 = vmatpush2.bf16.msra.mxu0 %v1007
        %1087 = vmatprep.mubr.bf16.mxu0 %v849
        %1088 = vmatmul.mubr.bf16.gmra.mxu0 %v848
        %v1089 = vpop.f32.mrf.mxu0
        %v1090 = vadd.f32 %v888, %v1089
        %v1091 = vpop.f32.mrf.mxu0
        %v1092 = vadd.f32 %v892, %v1091
        %v1093 = vpop.f32.mrf.mxu0
        %v1094 = vadd.f32 %v888, %v1093
        %v1095 = vpop.f32.mrf.mxu0
        %v1096 = vadd.f32 %v892, %v1095
        %1097 = vmatprep.mubr.bf16.mxu0 %v851
        %1098 = vmatmul.mubr.bf16.gmra.mxu0 %v850
        %v1099 = vpop.f32.mrf.mxu0
        %v1100 = vadd.f32 %v888, %v1099
        %v1101 = vpop.f32.mrf.mxu0
        %v1102 = vadd.f32 %v892, %v1101
        %v1103 = vpop.f32.mrf.mxu0
        %v1104 = vadd.f32 %v888, %v1103
        %v1105 = vpop.f32.mrf.mxu0
        %v1106 = vadd.f32 %v892, %v1105
        %1107 = vdwg.mxu0
        %v1108 = vtanh.pop %v1090
        %v1109 = vtanh.pop %v1094
        %v1110 = vtanh.pop %v1100
        %v1111 = vtanh.pop %v1104
        %v1112 = vmul.f32 %v1092, 0.2
        %v1113 = vmul.f32 %v1096, 0.2
        %v1114 = vmul.f32 %v1102, 0.2
        %v1115 = vmul.f32 %v1106, 0.2
        %v1116 = vmax.f32 %v1092, %v1112
        %v1117 = vmax.f32 %v1096, %v1113
        %v1118 = vmax.f32 %v1102, %v1114
        %v1119 = vmax.f32 %v1106, %v1115
        %1120 = vst [vmem:[%s327] sm:$0xff] %v344
        %1121 = vst [vmem:[%s327 + $0x10] sm:$0xff] %v345
        %1122 = vst [vmem:[%s327 + $0x20] sm:$0xff] %v346
        %1123 = vst [vmem:[%s327 + $0x30] sm:$0xff] %v347
        %v1124 = vmul.f32 %v1108, 1.442695
        %v1125 = vpow.pop %v1124
        %v1126 = vmul.f32 %v1109, 1.442695
        %v1127 = vpow.pop %v1126
        %v1128 = vmul.f32 %v1110, 1.442695
        %v1129 = vpow.pop %v1128
        %v1130 = vmul.f32 %v1111, 1.442695
        %v1131 = vpow.pop %v1130
        %v1132 = vmul.f32 %v1125, %v348
        %v1133 = vmul.f32 %v1127, %v349
        %v1134 = vmul.f32 %v1129, %v350
        %v1135 = vmul.f32 %v1131, %v351
        %v1136 = vadd.f32 %v1132, %v1116
        %v1137 = vadd.f32 %v1133, %v1117
        %v1138 = vadd.f32 %v1134, %v1118
        %v1139 = vadd.f32 %v1135, %v1119
        %1140 = vst [vmem:[%s327 + $0x8] sm:$0xff] %v1136
        %1141 = vst [vmem:[%s327 + $0x18] sm:$0xff] %v1137
        %1142 = vst [vmem:[%s327 + $0x28] sm:$0xff] %v1138
        %1143 = vst [vmem:[%s327 + $0x38] sm:$0xff] %v1139
        %1144 = vadd.xlane.f32.xlu0 %v1108
        %v1145 = vpop.xlane.xlu0 %1144
        %1146 = vadd.xlane.f32.xlu0 %v1109
        %v1147 = vpop.xlane.xlu0 %1146
        %1148 = vadd.xlane.f32.xlu0 %v1110
        %v1149 = vpop.xlane.xlu0 %1148
        %1150 = vadd.xlane.f32.xlu0 %v1111
        %v1151 = vpop.xlane.xlu0 %1150
        %vm1152 = vcmask 7168
        %1153 = vst.msk [vmem:[%s341] sm:$0xff] %vm1152, %v1145
        %1154 = vst.msk [vmem:[%s341 + $0x8] sm:$0xff] %vm1152, %v1147
        %1155 = vst.msk [vmem:[%s341 + $0x10] sm:$0xff] %vm1152, %v1149
        %1156 = vst.msk [vmem:[%s341 + $0x18] sm:$0xff] %vm1152, %v1151
        %s1157 = sand.u32 %s144, 1
        %s1158 = scalar_lea.sflag [#allocation4], %s1157
        %s1159 = sand.u32 %s144, 1
        %s1160 = smul.addr %s1159, 64
        %s1161 = scalar_lea.vmem [#allocation11], %s1160
        %s1162 = smul.u32 4, %s26
        %p1163 = scmp.lt.s32.totalorder %s1162, 15
        %s1164 = scalar_select %p1163, %s1162, 15
        %s1165 = smul.addr %s1164, 8
        %s1166 = scalar_lea.vmem %s6, %s1165
        // Predicated region
        $region61: #{tpu_custom_call.1} parent=39 // pred_check
          %p1167 = pneg %p154
        $region62: #{tpu_custom_call.1} parent=39 // pred_check_branch
          %1169 = sbr.rel (%p1167) target = $region64
        $region63: #{tpu_custom_call.1} parent=39 // pred_region
          %s1170 = smul.u32 4, %s26
          %s1172 = ssub.s32 1024, 1024
          %1173 = vsyncadd %s1158, %s1172
          %s1174 = smul.addr %s1170, 2
          %s1175 = smul.addr %s1174, 128
          %s1176 = scalar_lea.hbm %s5, %s1175
          %s1177 = sshll.u32 %s1161, 4
          %s1178 = int_to_ptr.vmem [resolvable:$true] %s1177
          %1183 = dma.vmem_to_hbm [thread:$0]  %s1178, 1024, %s1176, %s1158, 256, 256, 16
        $region64: #{tpu_custom_call.1} parent=39 // pred_fallthru
          _
        // Predicated region
        $region65: #{tpu_custom_call.1} parent=39 // pred_check
          %p1184 = pneg %p180
        $region66: #{tpu_custom_call.1} parent=39 // pred_check_branch
          %1186 = sbr.rel (%p1184) target = $region68
        $region67: #{tpu_custom_call.1} parent=39 // pred_region
          %s1187 = smul.u32 4, %s26
        $region68: #{tpu_custom_call.1} parent=39 // pred_fallthru
          _
      $region40: #{tpu_custom_call.1} parent=5 // pred_fallthru
        _
      %p1188 = scmp.le.s32.totalorder 2, %s21
      // Predicated region
      $region69: #{tpu_custom_call.1} parent=5 // pred_check
        %p1189 = pneg %p1188
      $region70: #{tpu_custom_call.1} parent=5 // pred_check_branch
        %1191 = sbr.rel (%p1189) target = $region72
      $region71: #{tpu_custom_call.1} parent=5 // pred_region
        %s1192 = ssub.s32 %s21, 2
        // Predicated region
        $region73: #{tpu_custom_call.1} parent=71 // pred_check
          %p1193 = pneg %p160
        $region74: #{tpu_custom_call.1} parent=71 // pred_check_branch
          %1195 = sbr.rel (%p1193) target = $region76
        $region75: #{tpu_custom_call.1} parent=71 // pred_region
          %s1196 = sand.u32 %s145, 1
          %s1197 = scalar_lea.sflag [#allocation4], %s1196
          %s1198 = sand.u32 %s145, 1
          %s1199 = smul.addr %s1198, 64
          %s1200 = scalar_lea.vmem [#allocation11], %s1199
          %1201 = dma.done %s1197, 1024
        $region76: #{tpu_custom_call.1} parent=71 // pred_fallthru
          _
        // Predicated region
        $region77: #{tpu_custom_call.1} parent=71 // pred_check
          %p1202 = pneg %p186
        $region78: #{tpu_custom_call.1} parent=71 // pred_check_branch
          %1204 = sbr.rel (%p1202) target = $region80
        $region79: #{tpu_custom_call.1} parent=71 // pred_region
          %s1205 = smul.u32 4, %s27
          %p1206 = scmp.lt.s32.totalorder %s1205, 15
          %s1207 = scalar_select %p1206, %s1205, 15
          %s1208 = smul.addr %s1207, 8
          %s1209 = scalar_lea.vmem %s6, %s1208
        $region80: #{tpu_custom_call.1} parent=71 // pred_fallthru
          _
      $region72: #{tpu_custom_call.1} parent=5 // pred_fallthru
        _
    $region6: #{tpu_custom_call.1} parent=1 // loop_footer
      %s25 = sadd.s32 1, %s21
    $region7: #{tpu_custom_call.1} parent=1 // loop_footer_branch
      %20 = sbr.rel target = $region3
    $region8: #{tpu_custom_call.1} parent=1 // loop_exit
      _
    %1210 = vsyncpa [#allocation3], 1
    %s1211 = scalar_lea.sflag [#allocation3], 1
    %1212 = vsyncpa %s1211, 1
    %1213 = vsyncpa [#allocation6], 1
    %1214 = vsyncpa [#allocation9], 1
    %1215 = vsyncpa [#allocation4], 1
    %s1216 = scalar_lea.sflag [#allocation4], 1
    %1217 = vsyncpa %s1216, 1

</llo_original>
